<compile_context>
chip_gen: v5e
topology: v5e:2x2
jax: 0.10.0
libtpu: 0.0.40
codegen_flags: <defaults>
</compile_context>

<pallas_src>
import jax
import jax.numpy as jnp
from jax.experimental import pallas as pl
from jax.experimental.pallas import tpu as pltpu


def _round_up(x, m):
    return ((x + m - 1) // m) * m


# Activations used between hidden layers.  NOTE: padded feature lanes are
# zero-filled and stay zero through the layer chain only because every
# supported activation satisfies act(0) == 0 (relu / silu / gelu / tanh).
# The padded lanes only ever multiply zero-padded weight rows, so even an
# act(0) != 0 activation would not corrupt visible outputs, but keep the
# invariant documented.
_ZERO_PRESERVING = ("relu", "silu", "swish", "gelu", "tanh")


def _apply_activation(x, activation):
    if activation == "relu":
        return jnp.maximum(x, jnp.zeros((), x.dtype))
    if activation in ("silu", "swish"):
        return x * jax.nn.sigmoid(x)
    if activation == "gelu":
        return jax.nn.gelu(x)
    if activation == "tanh":
        return jnp.tanh(x)
    raise ValueError(f"unsupported activation: {activation}")


def _make_mlp_kernel(num_layers, activation, compute_dtype):
    """Fused MLP kernel: the whole layer chain runs on one batch tile in VMEM."""

    def kernel(*refs):
        z_ref = refs[0]
        param_refs = refs[1:1 + 2 * num_layers]
        out_ref = refs[1 + 2 * num_layers]

        h = z_ref[...]
        for l in range(num_layers):
            w_ref = param_refs[2 * l]
            b_ref = param_refs[2 * l + 1]
            # MXU matmul in the weights' storage dtype, f32 accumulation.
            acc = jnp.dot(h.astype(w_ref.dtype), w_ref[...],
                          preferred_element_type=jnp.float32)
            # Epilogue (bias + activation) in compute_dtype (f32 by default;
            # bf16 opt-in on v6e/v7x halves VALU/vreg traffic).
            acc = acc.astype(compute_dtype) + b_ref[...].astype(compute_dtype)
            if l < num_layers - 1:  # no activation after the final Linear
                acc = _apply_activation(acc, activation)
            h = acc
        out_ref[...] = h.astype(out_ref.dtype)

    return kernel


def _vmem_capacity_bytes():
    """Physical per-core VMEM (64 MiB v7x, 128 MiB v5e/v6e)."""
    try:
        return int(pltpu.get_tpu_info().vmem_capacity_bytes)
    except Exception:
        return 64 << 20  # conservative: fits every TPU generation


def _lane_pad(dim):
    # 128-lane minimum; wide layers (>=192) padded to 256 to fill the
    # 2x256x256 MXU on v6e/v7x (128 already optimal on v5e's 4x128^2).
    return _round_up(dim, 256 if dim >= 192 else 128)


def pad_mlp_params(weights, biases):
    """One-time MXU/lane-friendly padding of the Linear parameters.

    weights[l]: [fan_in_l, fan_out_l] (PyTorch Linear weight, transposed)
    biases[l]:  [fan_out_l]
    Call once and reuse -- re-padding per forward would re-materialize every
    weight in HBM on each call.
    """
    assert len(weights) >= 1 and len(weights) == len(biases)
    dims = [int(weights[0].shape[0])] + [int(w.shape[1]) for w in weights]
    for l, (w, b) in enumerate(zip(weights, biases)):
        assert w.shape == (dims[l], dims[l + 1]), (l, w.shape)
        assert b.shape == (dims[l + 1],), (l, b.shape)

    # Layer-0 fan_in stays unpadded so z can be ingested with zero HBM copies
    # (its block's last dim equals the full array dim, which is allowed); all
    # fan_out dims are padded lane-dense so every intermediate and the output
    # store avoid masked vst tails.  (If d_input were badly misaligned for the
    # dtype's sublane packing, a one-time pad could be reintroduced here.)
    pdims = [dims[0]] + [_lane_pad(d) for d in dims[1:]]

    w_pad = [jnp.pad(w, ((0, pdims[l] - dims[l]), (0, pdims[l + 1] - dims[l + 1])))
             for l, w in enumerate(weights)]
    b_pad = [jnp.pad(jnp.reshape(b, (1, -1)),
                     ((0, 0), (0, pdims[l + 1] - dims[l + 1])))
             for l, b in enumerate(biases)]
    return w_pad, b_pad, dims, pdims


def _mlp_decoder_call(z, w_pad, b_pad, dims, pdims, *, activation, batch_tile,
                      compute_dtype):
    assert activation in _ZERO_PRESERVING, activation
    B, d_in = z.shape
    assert d_in == dims[0], (d_in, dims[0])
    num_layers = len(w_pad)
    out_dim = dims[-1]
    itemsize = jnp.dtype(z.dtype).itemsize

    flat_params = []
    for w, b in zip(w_pad, b_pad):
        flat_params.extend([w, b])
    p_bytes = sum(int(a.size) * a.dtype.itemsize for a in flat_params)

    # ---- generation-aware VMEM budget ------------------------------------
    physical_vmem = _vmem_capacity_bytes()
    cap = int(0.8 * physical_vmem)        # leave Mosaic internal-scratch slack
    headroom = 4 << 20
    per_row = (2 * d_in * itemsize              # z tile, double-buffered
               + 2 * pdims[-1] * itemsize       # out tile, double-buffered
               + 2 * max(pdims) * 4)            # live f32 intermediates
    # Size the batch tile conservatively (params counted double-buffered so the
    # no-pipeline_mode fallback below still fits the same tile).
    avail = cap - 2 * p_bytes - headroom
    max_rows = max(8, (avail // per_row) // 8 * 8) if avail > 8 * per_row else 8
    # TODO(synk): when padded params exceed ~half the per-core VMEM (very wide
    # hidden dims on v7x), split the layer chain across two pallas_calls or
    # pipeline each layer over K/N blocks instead of keeping all weights
    # VMEM-resident.

    if batch_tile is None:
        desired = 2048 if physical_vmem > (96 << 20) else 1024
        batch_tile = min(desired, _round_up(B, 8))
        if B >= 256:
            # Keep >= 2 grid steps so the "parallel" axis can shard across both
            # v7x TensorCores (one extra ~0.35us step on 1-TC chips: negligible).
            batch_tile = min(batch_tile, _round_up(pl.cdiv(B, 2), 8))
    batch_tile = min(max(8, _round_up(int(batch_tile), 8)), max_rows)
    grid = pl.cdiv(B, batch_tile)   # partial last block is masked by Pallas

    # Advisory cost so XLA schedules surrounding ops sensibly.
    flops = 2 * B * sum(pdims[l] * pdims[l + 1] for l in range(num_layers))
    transcendentals = 0 if activation == "relu" else B * sum(pdims[1:-1])
    bytes_accessed = B * d_in * itemsize + p_bytes + B * pdims[-1] * itemsize
    cost = pl.CostEstimate(flops=int(flops),
                           transcendentals=int(transcendentals),
                           bytes_accessed=int(bytes_accessed))

    kernel = _make_mlp_kernel(num_layers, activation, compute_dtype)

    def _run(single_buffered):
        def _const_spec(shape):
            # Constant index_map -> Pallas DMAs the block once; single-buffering
            # halves its resident VMEM (double-buffering buys nothing here).
            if single_buffered:
                return pl.BlockSpec(shape, lambda i: (0, 0),
                                    pipeline_mode=pl.Buffered(1))
            return pl.BlockSpec(shape, lambda i: (0, 0))

        in_specs = [pl.BlockSpec((batch_tile, d_in), lambda i: (i, 0))]
        for w, b in zip(w_pad, b_pad):
            in_specs.append(_const_spec(w.shape))
            in_specs.append(_const_spec(b.shape))
        out_spec = pl.BlockSpec((batch_tile, pdims[-1]), lambda i: (i, 0))

        param_resident = p_bytes if single_buffered else 2 * p_bytes
        vmem_limit = int(min(max(param_resident + batch_tile * per_row + headroom,
                                 32 << 20), cap))

        return pl.pallas_call(
            kernel,
            out_shape=jax.ShapeDtypeStruct((B, pdims[-1]), z.dtype),
            grid_spec=pltpu.PrefetchScalarGridSpec(
                num_scalar_prefetch=0,
                grid=(grid,),
                in_specs=in_specs,
                out_specs=out_spec,
            ),
            compiler_params=pltpu.CompilerParams(
                dimension_semantics=("parallel",),
                vmem_limit_bytes=vmem_limit),
            cost_estimate=cost,
        )(z, *flat_params)

    try:
        out_padded = _run(single_buffered=True)
    except Exception:
        # pipeline_mode / Buffered(1) unsupported on this JAX build: fall back
        # to default double-buffered params with a consistently doubled budget.
        out_padded = _run(single_buffered=False)

    if pdims[-1] == out_dim:
        return out_padded
    return out_padded[:, :out_dim]   # drop lane padding of the final features


class MLPDecoderPallas:
    """Pallas TPU forward for MLPDecoder.  Pads parameters once at init."""

    def __init__(self, weights, biases, *, activation="relu", batch_tile=None,
                 compute_dtype=None):
        self.w_pad, self.b_pad, self.dims, self.pdims = pad_mlp_params(weights,
                                                                       biases)
        self.activation = activation
        self.batch_tile = batch_tile
        self.compute_dtype = jnp.float32 if compute_dtype is None else compute_dtype

    def __call__(self, z):
        return _mlp_decoder_call(z, self.w_pad, self.b_pad, self.dims, self.pdims,
                                 activation=self.activation,
                                 batch_tile=self.batch_tile,
                                 compute_dtype=self.compute_dtype)


def mlp_decoder_forward(z, weights, biases, *, activation="relu",
                        batch_tile=None, compute_dtype=None):
    """One-off functional entry point (pads params on every call; prefer
    MLPDecoderPallas for repeated inference)."""
    return MLPDecoderPallas(weights, biases, activation=activation,
                            batch_tile=batch_tile,
                            compute_dtype=compute_dtype)(z)


def init_mlp_params(key, dims, dtype=jnp.float32):
    """Deterministic PyTorch-style init: U(-1/sqrt(fan_in), 1/sqrt(fan_in))."""
    weights, biases = [], []
    for l in range(len(dims) - 1):
        fan_in, fan_out = dims[l], dims[l + 1]
        key, kw, kb = jax.random.split(key, 3)
        bound = float(fan_in) ** -0.5
        weights.append(jax.random.uniform(kw, (fan_in, fan_out), dtype, -bound, bound))
        biases.append(jax.random.uniform(kb, (fan_out,), dtype, -bound, bound))
    return weights, biases


def mlp_decoder_reference(z, weights, biases, activation="relu",
                          compute_dtype=jnp.float32):
    """Pure-JAX reference mirroring the kernel's mixed-precision scheme."""
    h = z
    n = len(weights)
    for l, (w, b) in enumerate(zip(weights, biases)):
        h = jnp.dot(h.astype(w.dtype), w, preferred_element_type=jnp.float32)
        h = h.astype(compute_dtype) + b.astype(compute_dtype)
        if l < n - 1:
            h = _apply_activation(h, activation)
    return h.astype(z.dtype)


if __name__ == "__main__":
    # model_args consistent with MLPDecoder.__init__:
    #   d_input=16, d_hidden=[32, 32], output_dim=24, activation='relu'
    d_input, d_hidden, output_dim, activation = 16, [32, 32], 24, "relu"
    dims = [d_input] + d_hidden + [output_dim]

    key = jax.random.PRNGKey(0)
    key, kz = jax.random.split(key)
    weights, biases = init_mlp_params(key, dims)

    # Parameters padded once, reused across calls.
    dec = MLPDecoderPallas(weights, biases, activation=activation)

    # -- test 1: the literal module configuration (tiny batch, one grid step)
    B = 8
    z = jax.random.normal(kz, (B, d_input), jnp.float32)
    out = jax.block_until_ready(dec(z))
    ref = mlp_decoder_reference(z, weights, biases, activation)
    assert out.shape == (B, output_dim), out.shape
    assert jnp.allclose(out, ref, atol=1e-5, rtol=1e-5), "f32 mismatch (B=8)"

    # -- test 2: multi-step parallel grid + masked partial last block (200 % 64 != 0)
    key, kz2 = jax.random.split(key)
    B2 = 200
    z2 = jax.random.normal(kz2, (B2, d_input), jnp.float32)
    dec64 = MLPDecoderPallas(weights, biases, activation=activation, batch_tile=64)
    out2 = jax.block_until_ready(dec64(z2))
    ref2 = mlp_decoder_reference(z2, weights, biases, activation)
    assert out2.shape == (B2, output_dim), out2.shape
    assert jnp.allclose(out2, ref2, atol=1e-5, rtol=1e-5), "f32 mismatch (B=200)"

    # -- test 3: bf16 operands on the MXU (f32 accumulation) + bf16 epilogue
    zb = z2.astype(jnp.bfloat16)
    wb = [w.astype(jnp.bfloat16) for w in weights]
    bb = [b.astype(jnp.bfloat16) for b in biases]
    dec_bf16 = MLPDecoderPallas(wb, bb, activation=activation, batch_tile=64,
                                compute_dtype=jnp.bfloat16)
    out3 = jax.block_until_ready(dec_bf16(zb))
    ref3 = mlp_decoder_reference(zb, wb, bb, activation,
                                 compute_dtype=jnp.bfloat16)
    assert out3.shape == (B2, output_dim), out3.shape
    assert jnp.allclose(out3.astype(jnp.float32), ref3.astype(jnp.float32),
                        atol=5e-2, rtol=5e-2), "bf16 mismatch"

    # -- test 4: non-relu activation (exercises EUP / transcendental path)
    dec_silu = MLPDecoderPallas(weights, biases, activation="silu")
    out4 = jax.block_until_ready(dec_silu(z))
    ref4 = mlp_decoder_reference(z, weights, biases, "silu")
    assert jnp.allclose(out4, ref4, atol=1e-5, rtol=1e-5), "silu mismatch"

    print("KERNEL_OK")
</pallas_src>

<mosaic_0001>
module attributes {stable_mosaic.version = 11 : i64} {
  func.func @kernel(%arg0: i32, %arg1: memref<8x16xf32, #tpu.memory_space<vmem>>, %arg2: memref<16x128xf32, #tpu.memory_space<vmem>>, %arg3: memref<1x128xf32, #tpu.memory_space<vmem>>, %arg4: memref<128x128xf32, #tpu.memory_space<vmem>>, %arg5: memref<1x128xf32, #tpu.memory_space<vmem>>, %arg6: memref<128x128xf32, #tpu.memory_space<vmem>>, %arg7: memref<1x128xf32, #tpu.memory_space<vmem>>, %arg8: memref<8x128xf32, #tpu.memory_space<vmem>>) attributes {dimension_semantics = [#tpu.dimension_semantics<parallel>], iteration_bounds = array<i64: 1>, scalar_prefetch = 0 : i64, scratch_operands = 0 : i64, tpu.core_type = #tpu.core_type<tc>, window_params = [{transform_indices = @transform_0, window_bounds = array<i64: 8, 16>}, {pipeline_mode = #tpu.pipeline_mode<synchronous>, transform_indices = @transform_1, window_bounds = array<i64: 16, 128>}, {pipeline_mode = #tpu.pipeline_mode<synchronous>, transform_indices = @transform_2, window_bounds = array<i64: 1, 128>}, {pipeline_mode = #tpu.pipeline_mode<synchronous>, transform_indices = @transform_3, window_bounds = array<i64: 128, 128>}, {pipeline_mode = #tpu.pipeline_mode<synchronous>, transform_indices = @transform_4, window_bounds = array<i64: 1, 128>}, {pipeline_mode = #tpu.pipeline_mode<synchronous>, transform_indices = @transform_5, window_bounds = array<i64: 128, 128>}, {pipeline_mode = #tpu.pipeline_mode<synchronous>, transform_indices = @transform_6, window_bounds = array<i64: 1, 128>}, {transform_indices = @transform_7, window_bounds = array<i64: 8, 128>}]} {
    %c0 = arith.constant 0 : index
    %c0_0 = arith.constant 0 : index
    %0 = vector.load %arg1[%c0, %c0_0] : memref<8x16xf32, #tpu.memory_space<vmem>>, vector<8x16xf32>
    %c0_1 = arith.constant 0 : index
    %c0_2 = arith.constant 0 : index
    %1 = vector.load %arg2[%c0_1, %c0_2] : memref<16x128xf32, #tpu.memory_space<vmem>>, vector<16x128xf32>
    %cst = arith.constant dense<0.000000e+00> : vector<8x128xf32>
    %2 = tpu.matmul %0, %1, %cst {dimension_numbers = #tpu.dot_dimension_numbers<[1], [0], [0], [1], [0, 0, 1, 1], [], []>} : vector<8x16xf32>, vector<16x128xf32>, vector<8x128xf32> -> vector<8x128xf32>
    %c0_3 = arith.constant 0 : index
    %c0_4 = arith.constant 0 : index
    %3 = vector.load %arg3[%c0_3, %c0_4] : memref<1x128xf32, #tpu.memory_space<vmem>>, vector<1x128xf32>
    %4 = vector.broadcast %3 : vector<1x128xf32> to vector<8x128xf32>
    %5 = arith.addf %2, %4 : vector<8x128xf32>
    %cst_5 = arith.constant 0.000000e+00 : f32
    %6 = vector.broadcast %cst_5 : f32 to vector<8x128xf32>
    %7 = arith.maximumf %5, %6 : vector<8x128xf32>
    %c0_6 = arith.constant 0 : index
    %c0_7 = arith.constant 0 : index
    %8 = vector.load %arg4[%c0_6, %c0_7] : memref<128x128xf32, #tpu.memory_space<vmem>>, vector<128x128xf32>
    %cst_8 = arith.constant dense<0.000000e+00> : vector<8x128xf32>
    %9 = tpu.matmul %7, %8, %cst_8 {dimension_numbers = #tpu.dot_dimension_numbers<[1], [0], [0], [1], [0, 0, 1, 1], [], []>} : vector<8x128xf32>, vector<128x128xf32>, vector<8x128xf32> -> vector<8x128xf32>
    %c0_9 = arith.constant 0 : index
    %c0_10 = arith.constant 0 : index
    %10 = vector.load %arg5[%c0_9, %c0_10] : memref<1x128xf32, #tpu.memory_space<vmem>>, vector<1x128xf32>
    %11 = vector.broadcast %10 : vector<1x128xf32> to vector<8x128xf32>
    %12 = arith.addf %9, %11 : vector<8x128xf32>
    %cst_11 = arith.constant 0.000000e+00 : f32
    %13 = vector.broadcast %cst_11 : f32 to vector<8x128xf32>
    %14 = arith.maximumf %12, %13 : vector<8x128xf32>
    %c0_12 = arith.constant 0 : index
    %c0_13 = arith.constant 0 : index
    %15 = vector.load %arg6[%c0_12, %c0_13] : memref<128x128xf32, #tpu.memory_space<vmem>>, vector<128x128xf32>
    %cst_14 = arith.constant dense<0.000000e+00> : vector<8x128xf32>
    %16 = tpu.matmul %14, %15, %cst_14 {dimension_numbers = #tpu.dot_dimension_numbers<[1], [0], [0], [1], [0, 0, 1, 1], [], []>} : vector<8x128xf32>, vector<128x128xf32>, vector<8x128xf32> -> vector<8x128xf32>
    %c0_15 = arith.constant 0 : index
    %c0_16 = arith.constant 0 : index
    %17 = vector.load %arg7[%c0_15, %c0_16] : memref<1x128xf32, #tpu.memory_space<vmem>>, vector<1x128xf32>
    %18 = vector.broadcast %17 : vector<1x128xf32> to vector<8x128xf32>
    %19 = arith.addf %16, %18 : vector<8x128xf32>
    %c0_17 = arith.constant 0 : index
    %c0_18 = arith.constant 0 : index
    %20 = vector.load %arg8[%c0_17, %c0_18] : memref<8x128xf32, #tpu.memory_space<vmem>>, vector<8x128xf32>
    tpu.vector_store %arg8[%c0_17, %c0_18], %19 {strides = array<i32>} : memref<8x128xf32, #tpu.memory_space<vmem>>, vector<8x128xf32>,
    return
  }
  func.func @transform_0(%arg0: i32) -> (i32, i32) {
    %c0_i32 = arith.constant 0 : i32
    %c0_i32_0 = arith.constant 0 : i32
    return %arg0, %c0_i32 : i32, i32
  }
  func.func @transform_1(%arg0: i32) -> (i32, i32) {
    %c0_i32 = arith.constant 0 : i32
    %c0_i32_0 = arith.constant 0 : i32
    %c0_i32_1 = arith.constant 0 : i32
    return %c0_i32, %c0_i32_0 : i32, i32
  }
  func.func @transform_2(%arg0: i32) -> (i32, i32) {
    %c0_i32 = arith.constant 0 : i32
    %c0_i32_0 = arith.constant 0 : i32
    %c0_i32_1 = arith.constant 0 : i32
    return %c0_i32, %c0_i32_0 : i32, i32
  }
  func.func @transform_3(%arg0: i32) -> (i32, i32) {
    %c0_i32 = arith.constant 0 : i32
    %c0_i32_0 = arith.constant 0 : i32
    %c0_i32_1 = arith.constant 0 : i32
    return %c0_i32, %c0_i32_0 : i32, i32
  }
  func.func @transform_4(%arg0: i32) -> (i32, i32) {
    %c0_i32 = arith.constant 0 : i32
    %c0_i32_0 = arith.constant 0 : i32
    %c0_i32_1 = arith.constant 0 : i32
    return %c0_i32, %c0_i32_0 : i32, i32
  }
  func.func @transform_5(%arg0: i32) -> (i32, i32) {
    %c0_i32 = arith.constant 0 : i32
    %c0_i32_0 = arith.constant 0 : i32
    %c0_i32_1 = arith.constant 0 : i32
    return %c0_i32, %c0_i32_0 : i32, i32
  }
  func.func @transform_6(%arg0: i32) -> (i32, i32) {
    %c0_i32 = arith.constant 0 : i32
    %c0_i32_0 = arith.constant 0 : i32
    %c0_i32_1 = arith.constant 0 : i32
    return %c0_i32, %c0_i32_0 : i32, i32
  }
  func.func @transform_7(%arg0: i32) -> (i32, i32) {
    %c0_i32 = arith.constant 0 : i32
    %c0_i32_0 = arith.constant 0 : i32
    return %arg0, %c0_i32 : i32, i32
  }
}

module attributes {stable_mosaic.version = 11 : i64} {
  func.func @kernel(%arg0: i32, %arg1: memref<8x16xf32, #tpu.memory_space<vmem>>, %arg2: memref<16x128xf32, #tpu.memory_space<vmem>>, %arg3: memref<1x128xf32, #tpu.memory_space<vmem>>, %arg4: memref<128x128xf32, #tpu.memory_space<vmem>>, %arg5: memref<1x128xf32, #tpu.memory_space<vmem>>, %arg6: memref<128x128xf32, #tpu.memory_space<vmem>>, %arg7: memref<1x128xf32, #tpu.memory_space<vmem>>, %arg8: memref<8x128xf32, #tpu.memory_space<vmem>>) attributes {dimension_semantics = [#tpu.dimension_semantics<parallel>], iteration_bounds = array<i64: 1>, scalar_prefetch = 0 : i64, scratch_operands = 0 : i64, tpu.core_type = #tpu.core_type<tc>, window_params = [{transform_indices = @transform_0, window_bounds = array<i64: 8, 16>}, {pipeline_mode = #tpu.pipeline_mode<synchronous>, transform_indices = @transform_1, window_bounds = array<i64: 16, 128>}, {pipeline_mode = #tpu.pipeline_mode<synchronous>, transform_indices = @transform_2, window_bounds = array<i64: 1, 128>}, {pipeline_mode = #tpu.pipeline_mode<synchronous>, transform_indices = @transform_3, window_bounds = array<i64: 128, 128>}, {pipeline_mode = #tpu.pipeline_mode<synchronous>, transform_indices = @transform_4, window_bounds = array<i64: 1, 128>}, {pipeline_mode = #tpu.pipeline_mode<synchronous>, transform_indices = @transform_5, window_bounds = array<i64: 128, 128>}, {pipeline_mode = #tpu.pipeline_mode<synchronous>, transform_indices = @transform_6, window_bounds = array<i64: 1, 128>}, {transform_indices = @transform_7, window_bounds = array<i64: 8, 128>}]} {
    %c0 = arith.constant 0 : index
    %c0_0 = arith.constant 0 : index
    %0 = vector.load %arg1[%c0, %c0_0] : memref<8x16xf32, #tpu.memory_space<vmem>>, vector<8x16xf32>
    %c0_1 = arith.constant 0 : index
    %c0_2 = arith.constant 0 : index
    %1 = vector.load %arg2[%c0_1, %c0_2] : memref<16x128xf32, #tpu.memory_space<vmem>>, vector<16x128xf32>
    %cst = arith.constant dense<0.000000e+00> : vector<8x128xf32>
    %2 = tpu.matmul %0, %1, %cst {dimension_numbers = #tpu.dot_dimension_numbers<[1], [0], [0], [1], [0, 0, 1, 1], [], []>} : vector<8x16xf32>, vector<16x128xf32>, vector<8x128xf32> -> vector<8x128xf32>
    %c0_3 = arith.constant 0 : index
    %c0_4 = arith.constant 0 : index
    %3 = vector.load %arg3[%c0_3, %c0_4] : memref<1x128xf32, #tpu.memory_space<vmem>>, vector<1x128xf32>
    %4 = vector.broadcast %3 : vector<1x128xf32> to vector<8x128xf32>
    %5 = arith.addf %2, %4 : vector<8x128xf32>
    %cst_5 = arith.constant 0.000000e+00 : f32
    %6 = vector.broadcast %cst_5 : f32 to vector<8x128xf32>
    %7 = arith.maximumf %5, %6 : vector<8x128xf32>
    %c0_6 = arith.constant 0 : index
    %c0_7 = arith.constant 0 : index
    %8 = vector.load %arg4[%c0_6, %c0_7] : memref<128x128xf32, #tpu.memory_space<vmem>>, vector<128x128xf32>
    %cst_8 = arith.constant dense<0.000000e+00> : vector<8x128xf32>
    %9 = tpu.matmul %7, %8, %cst_8 {dimension_numbers = #tpu.dot_dimension_numbers<[1], [0], [0], [1], [0, 0, 1, 1], [], []>} : vector<8x128xf32>, vector<128x128xf32>, vector<8x128xf32> -> vector<8x128xf32>
    %c0_9 = arith.constant 0 : index
    %c0_10 = arith.constant 0 : index
    %10 = vector.load %arg5[%c0_9, %c0_10] : memref<1x128xf32, #tpu.memory_space<vmem>>, vector<1x128xf32>
    %11 = vector.broadcast %10 : vector<1x128xf32> to vector<8x128xf32>
    %12 = arith.addf %9, %11 : vector<8x128xf32>
    %cst_11 = arith.constant 0.000000e+00 : f32
    %13 = vector.broadcast %cst_11 : f32 to vector<8x128xf32>
    %14 = arith.maximumf %12, %13 : vector<8x128xf32>
    %c0_12 = arith.constant 0 : index
    %c0_13 = arith.constant 0 : index
    %15 = vector.load %arg6[%c0_12, %c0_13] : memref<128x128xf32, #tpu.memory_space<vmem>>, vector<128x128xf32>
    %cst_14 = arith.constant dense<0.000000e+00> : vector<8x128xf32>
    %16 = tpu.matmul %14, %15, %cst_14 {dimension_numbers = #tpu.dot_dimension_numbers<[1], [0], [0], [1], [0, 0, 1, 1], [], []>} : vector<8x128xf32>, vector<128x128xf32>, vector<8x128xf32> -> vector<8x128xf32>
    %c0_15 = arith.constant 0 : index
    %c0_16 = arith.constant 0 : index
    %17 = vector.load %arg7[%c0_15, %c0_16] : memref<1x128xf32, #tpu.memory_space<vmem>>, vector<1x128xf32>
    %18 = vector.broadcast %17 : vector<1x128xf32> to vector<8x128xf32>
    %19 = arith.addf %16, %18 : vector<8x128xf32>
    %c0_17 = arith.constant 0 : index
    %c0_18 = arith.constant 0 : index
    %20 = vector.load %arg8[%c0_17, %c0_18] : memref<8x128xf32, #tpu.memory_space<vmem>>, vector<8x128xf32>
    tpu.vector_store %arg8[%c0_17, %c0_18], %19 {strides = array<i32>} : memref<8x128xf32, #tpu.memory_space<vmem>>, vector<8x128xf32>,
    return
  }
  func.func @transform_0(%arg0: i32) -> (i32, i32) {
    %c0_i32 = arith.constant 0 : i32
    %c0_i32_0 = arith.constant 0 : i32
    return %arg0, %c0_i32 : i32, i32
  }
  func.func @transform_1(%arg0: i32) -> (i32, i32) {
    %c0_i32 = arith.constant 0 : i32
    %c0_i32_0 = arith.constant 0 : i32
    %c0_i32_1 = arith.constant 0 : i32
    return %c0_i32, %c0_i32_0 : i32, i32
  }
  func.func @transform_2(%arg0: i32) -> (i32, i32) {
    %c0_i32 = arith.constant 0 : i32
    %c0_i32_0 = arith.constant 0 : i32
    %c0_i32_1 = arith.constant 0 : i32
    return %c0_i32, %c0_i32_0 : i32, i32
  }
  func.func @transform_3(%arg0: i32) -> (i32, i32) {
    %c0_i32 = arith.constant 0 : i32
    %c0_i32_0 = arith.constant 0 : i32
    %c0_i32_1 = arith.constant 0 : i32
    return %c0_i32, %c0_i32_0 : i32, i32
  }
  func.func @transform_4(%arg0: i32) -> (i32, i32) {
    %c0_i32 = arith.constant 0 : i32
    %c0_i32_0 = arith.constant 0 : i32
    %c0_i32_1 = arith.constant 0 : i32
    return %c0_i32, %c0_i32_0 : i32, i32
  }
  func.func @transform_5(%arg0: i32) -> (i32, i32) {
    %c0_i32 = arith.constant 0 : i32
    %c0_i32_0 = arith.constant 0 : i32
    %c0_i32_1 = arith.constant 0 : i32
    return %c0_i32, %c0_i32_0 : i32, i32
  }
  func.func @transform_6(%arg0: i32) -> (i32, i32) {
    %c0_i32 = arith.constant 0 : i32
    %c0_i32_0 = arith.constant 0 : i32
    %c0_i32_1 = arith.constant 0 : i32
    return %c0_i32, %c0_i32_0 : i32, i32
  }
  func.func @transform_7(%arg0: i32) -> (i32, i32) {
    %c0_i32 = arith.constant 0 : i32
    %c0_i32_0 = arith.constant 0 : i32
    return %arg0, %c0_i32 : i32, i32
  }
}

</mosaic_0001>

<llo_original>
// kernel: tpu_custom_call.1
$region0: #{tpu_custom_call.1}
  #allocation0 [shape = 'u32[]', space=smem, size = 0x4, offset = 0x4, fixed_abs, tag = 'smem constant byte address 0x4 - core index']
  #allocation1 [shape = 'u32[72,128]{1,0:T(1,128)}', space=vmem, size = 0x9000, scoped, tag = 'internal scratch']
  %s0 = inlined_call_operand.hbm [shape: f32[8,16], index: 0, kind: input, shape index: {}]
  %s1 = inlined_call_operand.hbm [shape: f32[16,128], index: 1, kind: input, shape index: {}]
  %s2 = inlined_call_operand.vmem [shape: f32[1,128], index: 2, kind: input, shape index: {}]
  %s3 = inlined_call_operand.hbm [shape: f32[128,128], index: 3, kind: input, shape index: {}]
  %s4 = inlined_call_operand.vmem [shape: f32[1,128], index: 4, kind: input, shape index: {}]
  %s5 = inlined_call_operand.hbm [shape: f32[128,128], index: 5, kind: input, shape index: {}]
  %s6 = inlined_call_operand.vmem [shape: f32[1,128], index: 6, kind: input, shape index: {}]
  %s7 = inlined_call_operand.hbm [shape: f32[8,128], index: 7, kind: output, shape index: {}]
  %s8 = sld [smem:[#allocation0]]
  $region54: #{tpu_custom_call.1} parent=0
    _
  %s10 = ssub.s32 1, %s8
  %s11 = scalar_select 0, %s10, %s8
  $region1: #{tpu_custom_call.1} parent=0
    #allocation2 [shape = 'u8[4096]{0}', space=vmem, size = 0x1000, scoped, tag = 'input window, operand 0, single buffered']
    #allocation3 [shape = 's32[1]{0}', space=sflag, size = 0x4, scoped, tag = 'scoped memory for tpu_custom_call.1']
    #allocation4 [shape = 's32[1]{0}', space=sflag, size = 0x4, scoped, tag = 'scoped memory for tpu_custom_call.1']
    #allocation5 [shape = 'u8[8192]{0}', space=vmem, size = 0x2000, scoped, tag = 'input window, operand 1, single buffered']
    #allocation6 [shape = 's32[1]{0}', space=sflag, size = 0x4, scoped, tag = 'scoped memory for tpu_custom_call.1']
    #allocation7 [shape = 'u8[65536]{0}', space=vmem, size = 0x10000, scoped, tag = 'input window, operand 3, single buffered']
    #allocation8 [shape = 'u8[65536]{0}', space=vmem, size = 0x10000, scoped, tag = 'input window, operand 5, single buffered']
    #allocation9 [shape = 's32[1]{0}', space=sflag, size = 0x4, scoped, tag = 'scoped memory for tpu_custom_call.1']
    #allocation10 [shape = 'u8[4096]{0}', space=vmem, size = 0x1000, scoped, tag = 'output window, operand 0, single buffered']
    %12 = vsyncpa [#allocation3], 0
    %13 = vsyncpa [#allocation6], 0
    %14 = vsyncpa [#allocation9], 0
    %15 = vsyncpa [#allocation4], 0
    // Predicated region
    $region2: #{tpu_custom_call.1} parent=1 // pred_check
      _
    $region3: #{tpu_custom_call.1} parent=1 // pred_check_branch
      %17 = sbr.rel (0) target = $region5
    $region4: #{tpu_custom_call.1} parent=1 // pred_region
      %19 = vsyncadd [#allocation3], 0
      %s21 = sshll.u32 %s0, 4
      %s22 = int_to_ptr.hbm [resolvable:$true] %s21
      %s23 = sshll.u32 [#allocation2], 4
      %s24 = int_to_ptr.vmem [resolvable:$true] %s23
      %26 = dma.hbm_to_vmem [thread:$0]  %s22, 128, %s24, [#allocation3]
    $region5: #{tpu_custom_call.1} parent=1 // pred_fallthru
      _
    // Predicated region
    $region6: #{tpu_custom_call.1} parent=1 // pred_check
      _
    $region7: #{tpu_custom_call.1} parent=1 // pred_check_branch
      %28 = sbr.rel (0) target = $region9
    $region8: #{tpu_custom_call.1} parent=1 // pred_region
      %30 = vsyncadd [#allocation6], 0
      %s31 = sshll.u32 %s1, 4
      %s32 = int_to_ptr.hbm [resolvable:$true] %s31
      %s33 = sshll.u32 [#allocation5], 4
      %s34 = int_to_ptr.vmem [resolvable:$true] %s33
      %39 = dma.hbm_to_vmem [thread:$0]  %s32, 256, %s34, [#allocation6], 128, 128, 8
    $region9: #{tpu_custom_call.1} parent=1 // pred_fallthru
      _
    // Predicated region
    $region10: #{tpu_custom_call.1} parent=1 // pred_check
      _
    $region11: #{tpu_custom_call.1} parent=1 // pred_check_branch
      %41 = sbr.rel (0) target = $region13
    $region12: #{tpu_custom_call.1} parent=1 // pred_region
      _
    $region13: #{tpu_custom_call.1} parent=1 // pred_fallthru
      _
    // Predicated region
    $region14: #{tpu_custom_call.1} parent=1 // pred_check
      _
    $region15: #{tpu_custom_call.1} parent=1 // pred_check_branch
      %43 = sbr.rel (0) target = $region17
    $region16: #{tpu_custom_call.1} parent=1 // pred_region
      %45 = vsyncadd [#allocation6], 0
      %s46 = sshll.u32 %s3, 4
      %s47 = int_to_ptr.hbm [resolvable:$true] %s46
      %s48 = sshll.u32 [#allocation7], 4
      %s49 = int_to_ptr.vmem [resolvable:$true] %s48
      %54 = dma.hbm_to_vmem [thread:$0]  %s47, 2048, %s49, [#allocation6], 128, 128, 8
    $region17: #{tpu_custom_call.1} parent=1 // pred_fallthru
      _
    // Predicated region
    $region18: #{tpu_custom_call.1} parent=1 // pred_check
      _
    $region19: #{tpu_custom_call.1} parent=1 // pred_check_branch
      %56 = sbr.rel (0) target = $region21
    $region20: #{tpu_custom_call.1} parent=1 // pred_region
      _
    $region21: #{tpu_custom_call.1} parent=1 // pred_fallthru
      _
    // Predicated region
    $region22: #{tpu_custom_call.1} parent=1 // pred_check
      _
    $region23: #{tpu_custom_call.1} parent=1 // pred_check_branch
      %58 = sbr.rel (0) target = $region25
    $region24: #{tpu_custom_call.1} parent=1 // pred_region
      %60 = vsyncadd [#allocation9], 0
      %s61 = sshll.u32 %s5, 4
      %s62 = int_to_ptr.hbm [resolvable:$true] %s61
      %s63 = sshll.u32 [#allocation8], 4
      %s64 = int_to_ptr.vmem [resolvable:$true] %s63
      %69 = dma.hbm_to_vmem [thread:$0]  %s62, 2048, %s64, [#allocation9], 128, 128, 8
    $region25: #{tpu_custom_call.1} parent=1 // pred_fallthru
      _
    // Predicated region
    $region26: #{tpu_custom_call.1} parent=1 // pred_check
      _
    $region27: #{tpu_custom_call.1} parent=1 // pred_check_branch
      %71 = sbr.rel (0) target = $region29
    $region28: #{tpu_custom_call.1} parent=1 // pred_region
      _
    $region29: #{tpu_custom_call.1} parent=1 // pred_fallthru
      _
    // Predicated region
    $region30: #{tpu_custom_call.1} parent=1 // pred_check
      _
    $region31: #{tpu_custom_call.1} parent=1 // pred_check_branch
      %73 = sbr.rel (0) target = $region33
    $region32: #{tpu_custom_call.1} parent=1 // pred_region
      %75 = dma.done [#allocation3], 128
    $region33: #{tpu_custom_call.1} parent=1 // pred_fallthru
      _
    // Predicated region
    $region34: #{tpu_custom_call.1} parent=1 // pred_check
      _
    $region35: #{tpu_custom_call.1} parent=1 // pred_check_branch
      %77 = sbr.rel (0) target = $region37
    $region36: #{tpu_custom_call.1} parent=1 // pred_region
      %79 = dma.done [#allocation6], 256
    $region37: #{tpu_custom_call.1} parent=1 // pred_fallthru
      _
    // Predicated region
    $region38: #{tpu_custom_call.1} parent=1 // pred_check
      _
    $region39: #{tpu_custom_call.1} parent=1 // pred_check_branch
      %81 = sbr.rel (0) target = $region41
    $region40: #{tpu_custom_call.1} parent=1 // pred_region
      %83 = dma.done [#allocation6], 2048
    $region41: #{tpu_custom_call.1} parent=1 // pred_fallthru
      _
    // Predicated region
    $region42: #{tpu_custom_call.1} parent=1 // pred_check
      _
    $region43: #{tpu_custom_call.1} parent=1 // pred_check_branch
      %85 = sbr.rel (0) target = $region45
    $region44: #{tpu_custom_call.1} parent=1 // pred_region
      %87 = dma.done [#allocation9], 2048
    $region45: #{tpu_custom_call.1} parent=1 // pred_fallthru
      _
    %v88 = vld [vmem:[#allocation2] sm:$0xff]
    %v89 = vld [vmem:[#allocation5] sm:$0xff]
    %v90 = vld [vmem:[#allocation5 + $0x8] sm:$0xff]
    %v91 = vld [vmem:[%s2] sm:$0x1]
    %v93 = vperm.slane %v91, 0
    %vm95 = vcmask 130048
    %v97 = vsel %vm95, %v88, 0
    %99 = vmatpush.msra.mxu0 0.0
    %100 = vmatpush.msra.mxu0 0.0
    %101 = vmatpush.msra.mxu0 0.0
    %102 = vmatpush.msra.mxu0 0.0
    %103 = vmatpush.msra.mxu0 0.0
    %104 = vmatpush.msra.mxu0 0.0
    %105 = vmatpush.msra.mxu0 0.0
    %106 = vmatpush.msra.mxu0 0.0
    %107 = vmatpush.msra.mxu0 0.0
    %108 = vmatpush.msra.mxu0 0.0
    %109 = vmatpush.msra.mxu0 0.0
    %110 = vmatpush.msra.mxu0 0.0
    %111 = vmatpush.msra.mxu0 0.0
    %112 = vmatpush.msra.mxu0 0.0
    %113 = vmatpush.msra.mxu0 %v90
    %114 = vmatpush.msra.mxu0 %v89
    %115 = vmatmul.f32.gmra.mxu0 %v97
    %v116 = vpop.f32.mrf.mxu0
    %v117 = vadd.f32 %v93, %v116
    %118 = vdwg.mxu0
    %v119 = vmax.f32 %v117, 0.0
    %v120 = vld [vmem:[#allocation7] sm:$0xff]
    %v121 = vld [vmem:[#allocation7 + $0x8] sm:$0xff]
    %v122 = vld [vmem:[#allocation7 + $0x10] sm:$0xff]
    %v123 = vld [vmem:[#allocation7 + $0x18] sm:$0xff]
    %v124 = vld [vmem:[#allocation7 + $0x20] sm:$0xff]
    %v125 = vld [vmem:[#allocation7 + $0x28] sm:$0xff]
    %v126 = vld [vmem:[#allocation7 + $0x30] sm:$0xff]
    %v127 = vld [vmem:[#allocation7 + $0x38] sm:$0xff]
    %v128 = vld [vmem:[#allocation7 + $0x40] sm:$0xff]
    %v129 = vld [vmem:[#allocation7 + $0x48] sm:$0xff]
    %v130 = vld [vmem:[#allocation7 + $0x50] sm:$0xff]
    %v131 = vld [vmem:[#allocation7 + $0x58] sm:$0xff]
    %v132 = vld [vmem:[#allocation7 + $0x60] sm:$0xff]
    %v133 = vld [vmem:[#allocation7 + $0x68] sm:$0xff]
    %v134 = vld [vmem:[#allocation7 + $0x70] sm:$0xff]
    %v135 = vld [vmem:[#allocation7 + $0x78] sm:$0xff]
    %v136 = vld [vmem:[%s4] sm:$0x1]
    %v138 = vperm.slane %v136, 0
    %140 = vmatpush.msra.mxu0 %v135
    %141 = vmatpush.msra.mxu0 %v134
    %142 = vmatpush.msra.mxu0 %v133
    %143 = vmatpush.msra.mxu0 %v132
    %144 = vmatpush.msra.mxu0 %v131
    %145 = vmatpush.msra.mxu0 %v130
    %146 = vmatpush.msra.mxu0 %v129
    %147 = vmatpush.msra.mxu0 %v128
    %148 = vmatpush.msra.mxu0 %v127
    %149 = vmatpush.msra.mxu0 %v126
    %150 = vmatpush.msra.mxu0 %v125
    %151 = vmatpush.msra.mxu0 %v124
    %152 = vmatpush.msra.mxu0 %v123
    %153 = vmatpush.msra.mxu0 %v122
    %154 = vmatpush.msra.mxu0 %v121
    %155 = vmatpush.msra.mxu0 %v120
    %156 = vmatmul.f32.gmra.mxu0 %v119
    %v157 = vpop.f32.mrf.mxu0
    %v158 = vadd.f32 %v138, %v157
    %159 = vdwg.mxu0
    %v160 = vmax.f32 %v158, 0.0
    %v161 = vld [vmem:[#allocation8] sm:$0xff]
    %v162 = vld [vmem:[#allocation8 + $0x8] sm:$0xff]
    %v163 = vld [vmem:[#allocation8 + $0x10] sm:$0xff]
    %v164 = vld [vmem:[#allocation8 + $0x18] sm:$0xff]
    %v165 = vld [vmem:[#allocation8 + $0x20] sm:$0xff]
    %v166 = vld [vmem:[#allocation8 + $0x28] sm:$0xff]
    %v167 = vld [vmem:[#allocation8 + $0x30] sm:$0xff]
    %v168 = vld [vmem:[#allocation8 + $0x38] sm:$0xff]
    %v169 = vld [vmem:[#allocation8 + $0x40] sm:$0xff]
    %v170 = vld [vmem:[#allocation8 + $0x48] sm:$0xff]
    %v171 = vld [vmem:[#allocation8 + $0x50] sm:$0xff]
    %v172 = vld [vmem:[#allocation8 + $0x58] sm:$0xff]
    %v173 = vld [vmem:[#allocation8 + $0x60] sm:$0xff]
    %v174 = vld [vmem:[#allocation8 + $0x68] sm:$0xff]
    %v175 = vld [vmem:[#allocation8 + $0x70] sm:$0xff]
    %v176 = vld [vmem:[#allocation8 + $0x78] sm:$0xff]
    %v177 = vld [vmem:[%s6] sm:$0x1]
    %v179 = vperm.slane %v177, 0
    %181 = vmatpush.msra.mxu0 %v176
    %182 = vmatpush.msra.mxu0 %v175
    %183 = vmatpush.msra.mxu0 %v174
    %184 = vmatpush.msra.mxu0 %v173
    %185 = vmatpush.msra.mxu0 %v172
    %186 = vmatpush.msra.mxu0 %v171
    %187 = vmatpush.msra.mxu0 %v170
    %188 = vmatpush.msra.mxu0 %v169
    %189 = vmatpush.msra.mxu0 %v168
    %190 = vmatpush.msra.mxu0 %v167
    %191 = vmatpush.msra.mxu0 %v166
    %192 = vmatpush.msra.mxu0 %v165
    %193 = vmatpush.msra.mxu0 %v164
    %194 = vmatpush.msra.mxu0 %v163
    %195 = vmatpush.msra.mxu0 %v162
    %196 = vmatpush.msra.mxu0 %v161
    %197 = vmatmul.f32.gmra.mxu0 %v160
    %v198 = vpop.f32.mrf.mxu0
    %v199 = vadd.f32 %v179, %v198
    %200 = vdwg.mxu0
    %201 = vst [vmem:[#allocation10] sm:$0xff] %v199
    // Predicated region
    $region46: #{tpu_custom_call.1} parent=1 // pred_check
      _
    $region47: #{tpu_custom_call.1} parent=1 // pred_check_branch
      %203 = sbr.rel (0) target = $region49
    $region48: #{tpu_custom_call.1} parent=1 // pred_region
      %205 = vsyncadd [#allocation4], 0
      %s207 = sshll.u32 [#allocation10], 4
      %s208 = int_to_ptr.vmem [resolvable:$true] %s207
      %s209 = sshll.u32 %s7, 4
      %s210 = int_to_ptr.hbm [resolvable:$true] %s209
      %212 = dma.vmem_to_hbm [thread:$0]  %s208, 128, %s210, [#allocation4]
    $region49: #{tpu_custom_call.1} parent=1 // pred_fallthru
      _
    // Predicated region
    $region50: #{tpu_custom_call.1} parent=1 // pred_check
      _
    $region51: #{tpu_custom_call.1} parent=1 // pred_check_branch
      %214 = sbr.rel (0) target = $region53
    $region52: #{tpu_custom_call.1} parent=1 // pred_region
      %216 = dma.done [#allocation4], 128
    $region53: #{tpu_custom_call.1} parent=1 // pred_fallthru
      _
    %217 = vsyncpa [#allocation3], 1
    %218 = vsyncpa [#allocation6], 1
    %219 = vsyncpa [#allocation9], 1
    %220 = vsyncpa [#allocation4], 1

// kernel: tpu_custom_call.1
$region0: #{tpu_custom_call.1}
  #allocation0 [shape = 'u32[]', space=smem, size = 0x4, offset = 0x4, fixed_abs, tag = 'smem constant byte address 0x4 - core index']
  #allocation1 [shape = 'u32[72,128]{1,0:T(1,128)}', space=vmem, size = 0x9000, scoped, tag = 'internal scratch']
  %s0 = inlined_call_operand.hbm [shape: f32[8,16], index: 0, kind: input, shape index: {}]
  %s1 = inlined_call_operand.hbm [shape: f32[16,128], index: 1, kind: input, shape index: {}]
  %s2 = inlined_call_operand.vmem [shape: f32[1,128], index: 2, kind: input, shape index: {}]
  %s3 = inlined_call_operand.hbm [shape: f32[128,128], index: 3, kind: input, shape index: {}]
  %s4 = inlined_call_operand.vmem [shape: f32[1,128], index: 4, kind: input, shape index: {}]
  %s5 = inlined_call_operand.hbm [shape: f32[128,128], index: 5, kind: input, shape index: {}]
  %s6 = inlined_call_operand.vmem [shape: f32[1,128], index: 6, kind: input, shape index: {}]
  %s7 = inlined_call_operand.hbm [shape: f32[8,128], index: 7, kind: output, shape index: {}]
  %s8 = sld [smem:[#allocation0]]
  $region54: #{tpu_custom_call.1} parent=0
    _
  %s10 = ssub.s32 1, %s8
  %s11 = scalar_select 0, %s10, %s8
  $region1: #{tpu_custom_call.1} parent=0
    #allocation2 [shape = 'u8[4096]{0}', space=vmem, size = 0x1000, scoped, tag = 'input window, operand 0, single buffered']
    #allocation3 [shape = 's32[1]{0}', space=sflag, size = 0x4, scoped, tag = 'scoped memory for tpu_custom_call.1']
    #allocation4 [shape = 's32[1]{0}', space=sflag, size = 0x4, scoped, tag = 'scoped memory for tpu_custom_call.1']
    #allocation5 [shape = 'u8[8192]{0}', space=vmem, size = 0x2000, scoped, tag = 'input window, operand 1, single buffered']
    #allocation6 [shape = 's32[1]{0}', space=sflag, size = 0x4, scoped, tag = 'scoped memory for tpu_custom_call.1']
    #allocation7 [shape = 'u8[65536]{0}', space=vmem, size = 0x10000, scoped, tag = 'input window, operand 3, single buffered']
    #allocation8 [shape = 'u8[65536]{0}', space=vmem, size = 0x10000, scoped, tag = 'input window, operand 5, single buffered']
    #allocation9 [shape = 's32[1]{0}', space=sflag, size = 0x4, scoped, tag = 'scoped memory for tpu_custom_call.1']
    #allocation10 [shape = 'u8[4096]{0}', space=vmem, size = 0x1000, scoped, tag = 'output window, operand 0, single buffered']
    %12 = vsyncpa [#allocation3], 0
    %13 = vsyncpa [#allocation6], 0
    %14 = vsyncpa [#allocation9], 0
    %15 = vsyncpa [#allocation4], 0
    // Predicated region
    $region2: #{tpu_custom_call.1} parent=1 // pred_check
      _
    $region3: #{tpu_custom_call.1} parent=1 // pred_check_branch
      %17 = sbr.rel (0) target = $region5
    $region4: #{tpu_custom_call.1} parent=1 // pred_region
      %19 = vsyncadd [#allocation3], 0
      %s21 = sshll.u32 %s0, 4
      %s22 = int_to_ptr.hbm [resolvable:$true] %s21
      %s23 = sshll.u32 [#allocation2], 4
      %s24 = int_to_ptr.vmem [resolvable:$true] %s23
      %26 = dma.hbm_to_vmem [thread:$0]  %s22, 128, %s24, [#allocation3]
    $region5: #{tpu_custom_call.1} parent=1 // pred_fallthru
      _
    // Predicated region
    $region6: #{tpu_custom_call.1} parent=1 // pred_check
      _
    $region7: #{tpu_custom_call.1} parent=1 // pred_check_branch
      %28 = sbr.rel (0) target = $region9
    $region8: #{tpu_custom_call.1} parent=1 // pred_region
      %30 = vsyncadd [#allocation6], 0
      %s31 = sshll.u32 %s1, 4
      %s32 = int_to_ptr.hbm [resolvable:$true] %s31
      %s33 = sshll.u32 [#allocation5], 4
      %s34 = int_to_ptr.vmem [resolvable:$true] %s33
      %39 = dma.hbm_to_vmem [thread:$0]  %s32, 256, %s34, [#allocation6], 128, 128, 8
    $region9: #{tpu_custom_call.1} parent=1 // pred_fallthru
      _
    // Predicated region
    $region10: #{tpu_custom_call.1} parent=1 // pred_check
      _
    $region11: #{tpu_custom_call.1} parent=1 // pred_check_branch
      %41 = sbr.rel (0) target = $region13
    $region12: #{tpu_custom_call.1} parent=1 // pred_region
      _
    $region13: #{tpu_custom_call.1} parent=1 // pred_fallthru
      _
    // Predicated region
    $region14: #{tpu_custom_call.1} parent=1 // pred_check
      _
    $region15: #{tpu_custom_call.1} parent=1 // pred_check_branch
      %43 = sbr.rel (0) target = $region17
    $region16: #{tpu_custom_call.1} parent=1 // pred_region
      %45 = vsyncadd [#allocation6], 0
      %s46 = sshll.u32 %s3, 4
      %s47 = int_to_ptr.hbm [resolvable:$true] %s46
      %s48 = sshll.u32 [#allocation7], 4
      %s49 = int_to_ptr.vmem [resolvable:$true] %s48
      %54 = dma.hbm_to_vmem [thread:$0]  %s47, 2048, %s49, [#allocation6], 128, 128, 8
    $region17: #{tpu_custom_call.1} parent=1 // pred_fallthru
      _
    // Predicated region
    $region18: #{tpu_custom_call.1} parent=1 // pred_check
      _
    $region19: #{tpu_custom_call.1} parent=1 // pred_check_branch
      %56 = sbr.rel (0) target = $region21
    $region20: #{tpu_custom_call.1} parent=1 // pred_region
      _
    $region21: #{tpu_custom_call.1} parent=1 // pred_fallthru
      _
    // Predicated region
    $region22: #{tpu_custom_call.1} parent=1 // pred_check
      _
    $region23: #{tpu_custom_call.1} parent=1 // pred_check_branch
      %58 = sbr.rel (0) target = $region25
    $region24: #{tpu_custom_call.1} parent=1 // pred_region
      %60 = vsyncadd [#allocation9], 0
      %s61 = sshll.u32 %s5, 4
      %s62 = int_to_ptr.hbm [resolvable:$true] %s61
      %s63 = sshll.u32 [#allocation8], 4
      %s64 = int_to_ptr.vmem [resolvable:$true] %s63
      %69 = dma.hbm_to_vmem [thread:$0]  %s62, 2048, %s64, [#allocation9], 128, 128, 8
    $region25: #{tpu_custom_call.1} parent=1 // pred_fallthru
      _
    // Predicated region
    $region26: #{tpu_custom_call.1} parent=1 // pred_check
      _
    $region27: #{tpu_custom_call.1} parent=1 // pred_check_branch
      %71 = sbr.rel (0) target = $region29
    $region28: #{tpu_custom_call.1} parent=1 // pred_region
      _
    $region29: #{tpu_custom_call.1} parent=1 // pred_fallthru
      _
    // Predicated region
    $region30: #{tpu_custom_call.1} parent=1 // pred_check
      _
    $region31: #{tpu_custom_call.1} parent=1 // pred_check_branch
      %73 = sbr.rel (0) target = $region33
    $region32: #{tpu_custom_call.1} parent=1 // pred_region
      %75 = dma.done [#allocation3], 128
    $region33: #{tpu_custom_call.1} parent=1 // pred_fallthru
      _
    // Predicated region
    $region34: #{tpu_custom_call.1} parent=1 // pred_check
      _
    $region35: #{tpu_custom_call.1} parent=1 // pred_check_branch
      %77 = sbr.rel (0) target = $region37
    $region36: #{tpu_custom_call.1} parent=1 // pred_region
      %79 = dma.done [#allocation6], 256
    $region37: #{tpu_custom_call.1} parent=1 // pred_fallthru
      _
    // Predicated region
    $region38: #{tpu_custom_call.1} parent=1 // pred_check
      _
    $region39: #{tpu_custom_call.1} parent=1 // pred_check_branch
      %81 = sbr.rel (0) target = $region41
    $region40: #{tpu_custom_call.1} parent=1 // pred_region
      %83 = dma.done [#allocation6], 2048
    $region41: #{tpu_custom_call.1} parent=1 // pred_fallthru
      _
    // Predicated region
    $region42: #{tpu_custom_call.1} parent=1 // pred_check
      _
    $region43: #{tpu_custom_call.1} parent=1 // pred_check_branch
      %85 = sbr.rel (0) target = $region45
    $region44: #{tpu_custom_call.1} parent=1 // pred_region
      %87 = dma.done [#allocation9], 2048
    $region45: #{tpu_custom_call.1} parent=1 // pred_fallthru
      _
    %v88 = vld [vmem:[#allocation2] sm:$0xff]
    %v89 = vld [vmem:[#allocation5] sm:$0xff]
    %v90 = vld [vmem:[#allocation5 + $0x8] sm:$0xff]
    %v91 = vld [vmem:[%s2] sm:$0x1]
    %v93 = vperm.slane %v91, 0
    %vm95 = vcmask 130048
    %v97 = vsel %vm95, %v88, 0
    %99 = vmatpush.msra.mxu0 0.0
    %100 = vmatpush.msra.mxu0 0.0
    %101 = vmatpush.msra.mxu0 0.0
    %102 = vmatpush.msra.mxu0 0.0
    %103 = vmatpush.msra.mxu0 0.0
    %104 = vmatpush.msra.mxu0 0.0
    %105 = vmatpush.msra.mxu0 0.0
    %106 = vmatpush.msra.mxu0 0.0
    %107 = vmatpush.msra.mxu0 0.0
    %108 = vmatpush.msra.mxu0 0.0
    %109 = vmatpush.msra.mxu0 0.0
    %110 = vmatpush.msra.mxu0 0.0
    %111 = vmatpush.msra.mxu0 0.0
    %112 = vmatpush.msra.mxu0 0.0
    %113 = vmatpush.msra.mxu0 %v90
    %114 = vmatpush.msra.mxu0 %v89
    %115 = vmatmul.f32.gmra.mxu0 %v97
    %v116 = vpop.f32.mrf.mxu0
    %v117 = vadd.f32 %v93, %v116
    %118 = vdwg.mxu0
    %v119 = vmax.f32 %v117, 0.0
    %v120 = vld [vmem:[#allocation7] sm:$0xff]
    %v121 = vld [vmem:[#allocation7 + $0x8] sm:$0xff]
    %v122 = vld [vmem:[#allocation7 + $0x10] sm:$0xff]
    %v123 = vld [vmem:[#allocation7 + $0x18] sm:$0xff]
    %v124 = vld [vmem:[#allocation7 + $0x20] sm:$0xff]
    %v125 = vld [vmem:[#allocation7 + $0x28] sm:$0xff]
    %v126 = vld [vmem:[#allocation7 + $0x30] sm:$0xff]
    %v127 = vld [vmem:[#allocation7 + $0x38] sm:$0xff]
    %v128 = vld [vmem:[#allocation7 + $0x40] sm:$0xff]
    %v129 = vld [vmem:[#allocation7 + $0x48] sm:$0xff]
    %v130 = vld [vmem:[#allocation7 + $0x50] sm:$0xff]
    %v131 = vld [vmem:[#allocation7 + $0x58] sm:$0xff]
    %v132 = vld [vmem:[#allocation7 + $0x60] sm:$0xff]
    %v133 = vld [vmem:[#allocation7 + $0x68] sm:$0xff]
    %v134 = vld [vmem:[#allocation7 + $0x70] sm:$0xff]
    %v135 = vld [vmem:[#allocation7 + $0x78] sm:$0xff]
    %v136 = vld [vmem:[%s4] sm:$0x1]
    %v138 = vperm.slane %v136, 0
    %140 = vmatpush.msra.mxu0 %v135
    %141 = vmatpush.msra.mxu0 %v134
    %142 = vmatpush.msra.mxu0 %v133
    %143 = vmatpush.msra.mxu0 %v132
    %144 = vmatpush.msra.mxu0 %v131
    %145 = vmatpush.msra.mxu0 %v130
    %146 = vmatpush.msra.mxu0 %v129
    %147 = vmatpush.msra.mxu0 %v128
    %148 = vmatpush.msra.mxu0 %v127
    %149 = vmatpush.msra.mxu0 %v126
    %150 = vmatpush.msra.mxu0 %v125
    %151 = vmatpush.msra.mxu0 %v124
    %152 = vmatpush.msra.mxu0 %v123
    %153 = vmatpush.msra.mxu0 %v122
    %154 = vmatpush.msra.mxu0 %v121
    %155 = vmatpush.msra.mxu0 %v120
    %156 = vmatmul.f32.gmra.mxu0 %v119
    %v157 = vpop.f32.mrf.mxu0
    %v158 = vadd.f32 %v138, %v157
    %159 = vdwg.mxu0
    %v160 = vmax.f32 %v158, 0.0
    %v161 = vld [vmem:[#allocation8] sm:$0xff]
    %v162 = vld [vmem:[#allocation8 + $0x8] sm:$0xff]
    %v163 = vld [vmem:[#allocation8 + $0x10] sm:$0xff]
    %v164 = vld [vmem:[#allocation8 + $0x18] sm:$0xff]
    %v165 = vld [vmem:[#allocation8 + $0x20] sm:$0xff]
    %v166 = vld [vmem:[#allocation8 + $0x28] sm:$0xff]
    %v167 = vld [vmem:[#allocation8 + $0x30] sm:$0xff]
    %v168 = vld [vmem:[#allocation8 + $0x38] sm:$0xff]
    %v169 = vld [vmem:[#allocation8 + $0x40] sm:$0xff]
    %v170 = vld [vmem:[#allocation8 + $0x48] sm:$0xff]
    %v171 = vld [vmem:[#allocation8 + $0x50] sm:$0xff]
    %v172 = vld [vmem:[#allocation8 + $0x58] sm:$0xff]
    %v173 = vld [vmem:[#allocation8 + $0x60] sm:$0xff]
    %v174 = vld [vmem:[#allocation8 + $0x68] sm:$0xff]
    %v175 = vld [vmem:[#allocation8 + $0x70] sm:$0xff]
    %v176 = vld [vmem:[#allocation8 + $0x78] sm:$0xff]
    %v177 = vld [vmem:[%s6] sm:$0x1]
    %v179 = vperm.slane %v177, 0
    %181 = vmatpush.msra.mxu0 %v176
    %182 = vmatpush.msra.mxu0 %v175
    %183 = vmatpush.msra.mxu0 %v174
    %184 = vmatpush.msra.mxu0 %v173
    %185 = vmatpush.msra.mxu0 %v172
    %186 = vmatpush.msra.mxu0 %v171
    %187 = vmatpush.msra.mxu0 %v170
    %188 = vmatpush.msra.mxu0 %v169
    %189 = vmatpush.msra.mxu0 %v168
    %190 = vmatpush.msra.mxu0 %v167
    %191 = vmatpush.msra.mxu0 %v166
    %192 = vmatpush.msra.mxu0 %v165
    %193 = vmatpush.msra.mxu0 %v164
    %194 = vmatpush.msra.mxu0 %v163
    %195 = vmatpush.msra.mxu0 %v162
    %196 = vmatpush.msra.mxu0 %v161
    %197 = vmatmul.f32.gmra.mxu0 %v160
    %v198 = vpop.f32.mrf.mxu0
    %v199 = vadd.f32 %v179, %v198
    %200 = vdwg.mxu0
    %201 = vst [vmem:[#allocation10] sm:$0xff] %v199
    // Predicated region
    $region46: #{tpu_custom_call.1} parent=1 // pred_check
      _
    $region47: #{tpu_custom_call.1} parent=1 // pred_check_branch
      %203 = sbr.rel (0) target = $region49
    $region48: #{tpu_custom_call.1} parent=1 // pred_region
      %205 = vsyncadd [#allocation4], 0
      %s207 = sshll.u32 [#allocation10], 4
      %s208 = int_to_ptr.vmem [resolvable:$true] %s207
      %s209 = sshll.u32 %s7, 4
      %s210 = int_to_ptr.hbm [resolvable:$true] %s209
      %212 = dma.vmem_to_hbm [thread:$0]  %s208, 128, %s210, [#allocation4]
    $region49: #{tpu_custom_call.1} parent=1 // pred_fallthru
      _
    // Predicated region
    $region50: #{tpu_custom_call.1} parent=1 // pred_check
      _
    $region51: #{tpu_custom_call.1} parent=1 // pred_check_branch
      %214 = sbr.rel (0) target = $region53
    $region52: #{tpu_custom_call.1} parent=1 // pred_region
      %216 = dma.done [#allocation4], 128
    $region53: #{tpu_custom_call.1} parent=1 // pred_fallthru
      _
    %217 = vsyncpa [#allocation3], 1
    %218 = vsyncpa [#allocation6], 1
    %219 = vsyncpa [#allocation9], 1
    %220 = vsyncpa [#allocation4], 1

</llo_original>
